<compile_context>
chip_gen: v5e
topology: v5e:2x2
jax: 0.10.0
libtpu: 0.0.40
codegen_flags: <defaults>
</compile_context>

<pallas_src>
import functools
import math

import jax
import jax.numpy as jnp
from jax.experimental import pallas as pl
from jax.experimental.pallas import tpu as pltpu


def _ceil_div(a, b):
    return -(-a // b)


# ------------------------------ Pallas kernel ---------------------------------
def _fused_conv_kernel(w_ref, b_ref, x_ref, act_ref, pre_ref, pt_ref, *,
                       C, KH, KW, OH, Wq, stride):
    """One batch item: build im2col patches in VMEM, one MXU matmul, bias + LeakyReLU.

    w_ref : (OC, K)              bf16, spectral-normalized weight, rows ordered (kh, kw, c)
    b_ref : (OC, 1)              f32 bias
    x_ref : (1, s*s, C, Lp)      bf16 space-to-depth padded input (flattened Hq*Wq + pad)
    act/pre_ref : (1, OC, OH*Wq) f32 outputs (Wq-OW halo columns are garbage, sliced off later)
    pt_ref : (K, OH*Wq)          f32 VMEM scratch holding the patch matrix
    """
    s = stride
    Lw = OH * Wq
    # KH*KW shifted "taps": every slice below is static and contiguous (lane-dim slice of a
    # parity plane), so no strided loads / gathers / minor-dim reshapes are needed.
    for t in range(KH * KW):
        i, j = divmod(t, KW)
        par = (i % s) * s + (j % s)          # which parity plane
        off = (i // s) * Wq + (j // s)       # flat offset inside that plane
        sl = x_ref[0, par, :, off:off + Lw]                      # (C, OH*Wq) bf16
        pt_ref[t * C:(t + 1) * C, :] = sl.astype(jnp.float32)
    patches = pt_ref[...].astype(jnp.bfloat16)                   # (K, OH*Wq) bf16
    pre = jnp.dot(w_ref[...], patches,
                  preferred_element_type=jnp.float32)            # (OC, OH*Wq) f32 on MXU
    pre = pre + b_ref[...]                                       # broadcast bias over lanes
    pre_ref[0] = pre.astype(pre_ref.dtype)                       # pre-activation ("x")
    act_ref[0] = jnp.maximum(pre, 0.2 * pre).astype(act_ref.dtype)   # LeakyReLU(0.2)


# ------------------------------- VMEM budget -----------------------------------
def _vmem_limit_bytes(working_set_bytes):
    cap = None
    get_info = getattr(pltpu, "get_tpu_info", None)
    if get_info is not None:
        try:
            cap = getattr(get_info(), "vmem_capacity_bytes", None)
        except Exception:
            cap = None
    if not cap:
        cap = 64 << 20                  # assume v7x per-TensorCore VMEM (smallest of the three)
    # 16 MiB floor == v5e default scoped limit (always safe); never above ~3/4 of physical VMEM.
    return int(min(max(3 * working_set_bytes, 16 << 20), (3 * cap) // 4))


# ------------------------------- JAX wrapper ------------------------------------
def _spectral_normalize(weight, u, eps=1e-12):
    """One power-iteration step (PyTorch spectral_norm). Returns (W / sigma, u_new)."""
    oc = weight.shape[0]
    w_mat = weight.reshape(oc, -1)                               # (OC, K), PyTorch order
    v = w_mat.T @ u
    v = v / (jnp.linalg.norm(v) + eps)
    u_new = w_mat @ v
    u_new = u_new / (jnp.linalg.norm(u_new) + eps)
    sigma = jnp.dot(u_new, w_mat @ v)                            # sigma = u_new^T W v
    return weight / sigma, u_new


def conv_with_activation_encode(x, weight, bias, u, stride, padding,
                                return_updated_u=False):
    """Forward of ConvWithActivation_encode: (leaky_relu(conv(x), 0.2), conv(x))."""
    n, c, h, w = x.shape
    oc, ic, kh, kw = weight.shape
    assert ic == c
    s = stride
    oh = (h + 2 * padding - kh) // s + 1
    ow = (w + 2 * padding - kw) // s + 1
    di, dj = (kh - 1) // s, (kw - 1) // s        # max row/col tap offsets in block coords
    hq = max(_ceil_div(h + 2 * padding, s), oh + di)
    wq = max(_ceil_div(w + 2 * padding, s), ow + dj)
    hp, wp = hq * s, wq * s
    l_flat = hq * wq
    l_pad = max(l_flat, (oh + di) * wq + dj)     # keep the last static tap slice in-bounds
    lw = oh * wq                                  # kernel matmul column count (incl. halo cols)
    k = c * kh * kw

    w_sn, u_new = _spectral_normalize(weight, u)

    # --- one bf16 pass over the input: pad + space-to-depth (stride parity planes) + flatten.
    xb = x.astype(jnp.bfloat16)
    xp = jnp.pad(xb, ((0, 0), (0, 0),
                      (padding, hp - h - padding), (padding, wp - w - padding)))
    xr = xp.reshape(n, c, hq, s, wq, s).transpose(0, 3, 5, 1, 2, 4)   # (N, s, s, C, Hq, Wq)
    xflat = xr.reshape(n, s * s, c, l_flat)
    if l_pad > l_flat:
        xflat = jnp.pad(xflat, ((0, 0), (0, 0), (0, 0), (0, l_pad - l_flat)))

    # Weight flattened in (kh, kw, c) row order to match the in-kernel patch rows; bf16 stream.
    w_flat = w_sn.transpose(0, 2, 3, 1).reshape(oc, k).astype(jnp.bfloat16)
    b2d = bias.reshape(oc, 1).astype(jnp.float32)

    kernel = functools.partial(_fused_conv_kernel,
                               C=c, KH=kh, KW=kw, OH=oh, Wq=wq, stride=s)

    # VMEM working-set estimate (double-buffered streams + resident weight/bias + scratch).
    in_bytes = s * s * c * l_pad * 2
    out_bytes = 2 * oc * lw * 4
    resident = oc * k * 2 + oc * 4
    scratch = k * lw * 4
    working = 2 * (in_bytes + out_bytes + resident) + scratch

    cost = pl.CostEstimate(
        flops=2 * n * oc * k * lw + 3 * n * oc * lw,
        transcendentals=0,
        bytes_accessed=n * in_bytes + resident + n * out_bytes,
    )

    act_w, pre_w = pl.pallas_call(
        kernel,
        out_shape=(jax.ShapeDtypeStruct((n, oc, lw), jnp.float32),   # activated
                   jax.ShapeDtypeStruct((n, oc, lw), jnp.float32)),  # pre-activation
        grid=(n,),
        in_specs=[
            pl.BlockSpec((oc, k), lambda i: (0, 0)),                 # resident weight
            pl.BlockSpec((oc, 1), lambda i: (0, 0)),                 # resident bias
            pl.BlockSpec((1, s * s, c, l_pad), lambda i: (i, 0, 0, 0)),  # one image / step
        ],
        out_specs=(
            pl.BlockSpec((1, oc, lw), lambda i: (i, 0, 0)),
            pl.BlockSpec((1, oc, lw), lambda i: (i, 0, 0)),
        ),
        scratch_shapes=[pltpu.VMEM((k, lw), jnp.float32)],
        compiler_params=pltpu.CompilerParams(
            dimension_semantics=("parallel",),                       # batch items independent
            vmem_limit_bytes=_vmem_limit_bytes(working),
        ),
        cost_estimate=cost,
    )(w_flat, b2d, xflat)

    # (N, OC, OH*Wq) -> (N, OC, OH, Wq) is a free reshape; dropping the Wq-OW halo columns
    # is the only remaining wrapper-side copy (no output transposes).
    act = act_w.reshape(n, oc, oh, wq)[:, :, :, :ow]
    pre = pre_w.reshape(n, oc, oh, wq)[:, :, :, :ow]

    if return_updated_u:
        return (act, pre), u_new
    return act, pre


# ----------------------------------- main ----------------------------------------
if __name__ == "__main__":
    key = jax.random.PRNGKey(0)
    k_x, k_w, k_b, k_u = jax.random.split(key, 4)

    # Small shapes consistent with the module: Conv2d(4, 8, k=3, stride=2, pad=1).
    n, ic, h, w = 2, 4, 16, 16
    oc, kh, kw = 8, 3, 3
    stride, padding = 2, 1

    x = jax.random.normal(k_x, (n, ic, h, w), dtype=jnp.float32)

    # kaiming_normal_ (fan_in, gain=sqrt(2)) deterministic init
    fan_in = ic * kh * kw
    weight = jax.random.normal(k_w, (oc, ic, kh, kw), dtype=jnp.float32) * jnp.sqrt(2.0 / fan_in)
    # PyTorch Conv2d default bias init: U(-1/sqrt(fan_in), 1/sqrt(fan_in))
    bound = 1.0 / math.sqrt(fan_in)
    bias = jax.random.uniform(k_b, (oc,), minval=-bound, maxval=bound, dtype=jnp.float32)
    # spectral-norm power-iteration vector u (normalized gaussian, as PyTorch)
    u = jax.random.normal(k_u, (oc,), dtype=jnp.float32)
    u = u / (jnp.linalg.norm(u) + 1e-12)

    act, pre = conv_with_activation_encode(x, weight, bias, u, stride, padding)
    jax.block_until_ready((act, pre))

    oh = (h + 2 * padding - kh) // stride + 1
    ow = (w + 2 * padding - kw) // stride + 1
    assert act.shape == (n, oc, oh, ow) and pre.shape == (n, oc, oh, ow)

    # Reference 1 (tight): XLA conv with the SAME bf16-rounded streamed operands, f32 accum.
    w_sn_ref, _ = _spectral_normalize(weight, u)
    x_bf = x.astype(jnp.bfloat16).astype(jnp.float32)
    w_bf = w_sn_ref.astype(jnp.bfloat16).astype(jnp.float32)
    ref_pre = jax.lax.conv_general_dilated(
        x_bf, w_bf, window_strides=(stride, stride),
        padding=((padding, padding), (padding, padding)),
        dimension_numbers=("NCHW", "OIHW", "NCHW"),
        precision=jax.lax.Precision.HIGHEST,
    ) + bias.reshape(1, oc, 1, 1)
    ref_act = jnp.maximum(ref_pre, 0.2 * ref_pre)
    assert jnp.allclose(pre, ref_pre, rtol=1e-3, atol=1e-3), \
        float(jnp.max(jnp.abs(pre - ref_pre)))
    assert jnp.allclose(act, ref_act, rtol=1e-3, atol=1e-3)

    # Reference 2 (loose sanity): full-f32 conv — difference is only bf16 operand rounding.
    ref_pre_f32 = jax.lax.conv_general_dilated(
        x, w_sn_ref, window_strides=(stride, stride),
        padding=((padding, padding), (padding, padding)),
        dimension_numbers=("NCHW", "OIHW", "NCHW"),
        precision=jax.lax.Precision.HIGHEST,
    ) + bias.reshape(1, oc, 1, 1)
    assert jnp.allclose(pre, ref_pre_f32, rtol=5e-2, atol=5e-2)

    print("KERNEL_OK")
</pallas_src>

<mosaic_0001>
module attributes {stable_mosaic.version = 11 : i64} {
  func.func @_fused_conv_kernel(%arg0: i32, %arg1: memref<8x36xbf16, #tpu.memory_space<vmem>>, %arg2: memref<8x1xf32, #tpu.memory_space<vmem>>, %arg3: memref<1x4x4x82xbf16, #tpu.memory_space<vmem>>, %arg4: memref<1x8x72xf32, #tpu.memory_space<vmem>>, %arg5: memref<1x8x72xf32, #tpu.memory_space<vmem>>, %arg6: memref<36x72xf32, #tpu.memory_space<vmem>>) attributes {dimension_semantics = [#tpu.dimension_semantics<parallel>], iteration_bounds = array<i64: 2>, scalar_prefetch = 0 : i64, scratch_operands = 1 : i64, tpu.core_type = #tpu.core_type<tc>, window_params = [{pipeline_mode = #tpu.pipeline_mode<synchronous>, transform_indices = @transform_0, window_bounds = array<i64: 8, 36>}, {pipeline_mode = #tpu.pipeline_mode<synchronous>, transform_indices = @transform_1, window_bounds = array<i64: 8, 1>}, {transform_indices = @transform_2, window_bounds = array<i64: 1, 4, 4, 82>}, {transform_indices = @transform_3, window_bounds = array<i64: 1, 8, 72>}, {transform_indices = @transform_4, window_bounds = array<i64: 1, 8, 72>}]} {
    %c0 = arith.constant 0 : index
    %c0_0 = arith.constant 0 : index
    %c0_1 = arith.constant 0 : index
    %c0_2 = arith.constant 0 : index
    %0 = vector.load %arg3[%c0, %c0_0, %c0_1, %c0_2] : memref<1x4x4x82xbf16, #tpu.memory_space<vmem>>, vector<1x1x4x72xbf16>
    %1 = vector.shape_cast %0 : vector<1x1x4x72xbf16> to vector<4x72xbf16>
    %2 = arith.extf %1 : vector<4x72xbf16> to vector<4x72xf32>
    %c0_3 = arith.constant 0 : index
    %c0_4 = arith.constant 0 : index
    %3 = vector.load %arg6[%c0_3, %c0_4] : memref<36x72xf32, #tpu.memory_space<vmem>>, vector<4x72xf32>
    tpu.vector_store %arg6[%c0_3, %c0_4], %2 {strides = array<i32>} : memref<36x72xf32, #tpu.memory_space<vmem>>, vector<4x72xf32>,
    %c0_5 = arith.constant 0 : index
    %c1 = arith.constant 1 : index
    %c0_6 = arith.constant 0 : index
    %c0_7 = arith.constant 0 : index
    %4 = vector.load %arg3[%c0_5, %c1, %c0_6, %c0_7] : memref<1x4x4x82xbf16, #tpu.memory_space<vmem>>, vector<1x1x4x72xbf16>
    %5 = vector.shape_cast %4 : vector<1x1x4x72xbf16> to vector<4x72xbf16>
    %6 = arith.extf %5 : vector<4x72xbf16> to vector<4x72xf32>
    %c4 = arith.constant 4 : index
    %c0_8 = arith.constant 0 : index
    %7 = vector.load %arg6[%c4, %c0_8] : memref<36x72xf32, #tpu.memory_space<vmem>>, vector<4x72xf32>
    tpu.vector_store %arg6[%c4, %c0_8], %6 {strides = array<i32>} : memref<36x72xf32, #tpu.memory_space<vmem>>, vector<4x72xf32>,
    %c0_9 = arith.constant 0 : index
    %c0_10 = arith.constant 0 : index
    %c0_11 = arith.constant 0 : index
    %c1_12 = arith.constant 1 : index
    %8 = vector.load %arg3[%c0_9, %c0_10, %c0_11, %c1_12] : memref<1x4x4x82xbf16, #tpu.memory_space<vmem>>, vector<1x1x4x72xbf16>
    %9 = vector.shape_cast %8 : vector<1x1x4x72xbf16> to vector<4x72xbf16>
    %10 = arith.extf %9 : vector<4x72xbf16> to vector<4x72xf32>
    %c8 = arith.constant 8 : index
    %c0_13 = arith.constant 0 : index
    %11 = vector.load %arg6[%c8, %c0_13] : memref<36x72xf32, #tpu.memory_space<vmem>>, vector<4x72xf32>
    tpu.vector_store %arg6[%c8, %c0_13], %10 {strides = array<i32>} : memref<36x72xf32, #tpu.memory_space<vmem>>, vector<4x72xf32>,
    %c0_14 = arith.constant 0 : index
    %c2 = arith.constant 2 : index
    %c0_15 = arith.constant 0 : index
    %c0_16 = arith.constant 0 : index
    %12 = vector.load %arg3[%c0_14, %c2, %c0_15, %c0_16] : memref<1x4x4x82xbf16, #tpu.memory_space<vmem>>, vector<1x1x4x72xbf16>
    %13 = vector.shape_cast %12 : vector<1x1x4x72xbf16> to vector<4x72xbf16>
    %14 = arith.extf %13 : vector<4x72xbf16> to vector<4x72xf32>
    %c12 = arith.constant 12 : index
    %c0_17 = arith.constant 0 : index
    %15 = vector.load %arg6[%c12, %c0_17] : memref<36x72xf32, #tpu.memory_space<vmem>>, vector<4x72xf32>
    tpu.vector_store %arg6[%c12, %c0_17], %14 {strides = array<i32>} : memref<36x72xf32, #tpu.memory_space<vmem>>, vector<4x72xf32>,
    %c0_18 = arith.constant 0 : index
    %c3 = arith.constant 3 : index
    %c0_19 = arith.constant 0 : index
    %c0_20 = arith.constant 0 : index
    %16 = vector.load %arg3[%c0_18, %c3, %c0_19, %c0_20] : memref<1x4x4x82xbf16, #tpu.memory_space<vmem>>, vector<1x1x4x72xbf16>
    %17 = vector.shape_cast %16 : vector<1x1x4x72xbf16> to vector<4x72xbf16>
    %18 = arith.extf %17 : vector<4x72xbf16> to vector<4x72xf32>
    %c16 = arith.constant 16 : index
    %c0_21 = arith.constant 0 : index
    %19 = vector.load %arg6[%c16, %c0_21] : memref<36x72xf32, #tpu.memory_space<vmem>>, vector<4x72xf32>
    tpu.vector_store %arg6[%c16, %c0_21], %18 {strides = array<i32>} : memref<36x72xf32, #tpu.memory_space<vmem>>, vector<4x72xf32>,
    %c0_22 = arith.constant 0 : index
    %c2_23 = arith.constant 2 : index
    %c0_24 = arith.constant 0 : index
    %c1_25 = arith.constant 1 : index
    %20 = vector.load %arg3[%c0_22, %c2_23, %c0_24, %c1_25] : memref<1x4x4x82xbf16, #tpu.memory_space<vmem>>, vector<1x1x4x72xbf16>
    %21 = vector.shape_cast %20 : vector<1x1x4x72xbf16> to vector<4x72xbf16>
    %22 = arith.extf %21 : vector<4x72xbf16> to vector<4x72xf32>
    %c20 = arith.constant 20 : index
    %c0_26 = arith.constant 0 : index
    %23 = vector.load %arg6[%c20, %c0_26] : memref<36x72xf32, #tpu.memory_space<vmem>>, vector<4x72xf32>
    tpu.vector_store %arg6[%c20, %c0_26], %22 {strides = array<i32>} : memref<36x72xf32, #tpu.memory_space<vmem>>, vector<4x72xf32>,
    %c0_27 = arith.constant 0 : index
    %c0_28 = arith.constant 0 : index
    %c0_29 = arith.constant 0 : index
    %c9 = arith.constant 9 : index
    %24 = vector.load %arg3[%c0_27, %c0_28, %c0_29, %c9] : memref<1x4x4x82xbf16, #tpu.memory_space<vmem>>, vector<1x1x4x72xbf16>
    %25 = vector.shape_cast %24 : vector<1x1x4x72xbf16> to vector<4x72xbf16>
    %26 = arith.extf %25 : vector<4x72xbf16> to vector<4x72xf32>
    %c24 = arith.constant 24 : index
    %c0_30 = arith.constant 0 : index
    %27 = vector.load %arg6[%c24, %c0_30] : memref<36x72xf32, #tpu.memory_space<vmem>>, vector<4x72xf32>
    tpu.vector_store %arg6[%c24, %c0_30], %26 {strides = array<i32>} : memref<36x72xf32, #tpu.memory_space<vmem>>, vector<4x72xf32>,
    %c0_31 = arith.constant 0 : index
    %c1_32 = arith.constant 1 : index
    %c0_33 = arith.constant 0 : index
    %c9_34 = arith.constant 9 : index
    %28 = vector.load %arg3[%c0_31, %c1_32, %c0_33, %c9_34] : memref<1x4x4x82xbf16, #tpu.memory_space<vmem>>, vector<1x1x4x72xbf16>
    %29 = vector.shape_cast %28 : vector<1x1x4x72xbf16> to vector<4x72xbf16>
    %30 = arith.extf %29 : vector<4x72xbf16> to vector<4x72xf32>
    %c28 = arith.constant 28 : index
    %c0_35 = arith.constant 0 : index
    %31 = vector.load %arg6[%c28, %c0_35] : memref<36x72xf32, #tpu.memory_space<vmem>>, vector<4x72xf32>
    tpu.vector_store %arg6[%c28, %c0_35], %30 {strides = array<i32>} : memref<36x72xf32, #tpu.memory_space<vmem>>, vector<4x72xf32>,
    %c0_36 = arith.constant 0 : index
    %c0_37 = arith.constant 0 : index
    %c0_38 = arith.constant 0 : index
    %c10 = arith.constant 10 : index
    %32 = vector.load %arg3[%c0_36, %c0_37, %c0_38, %c10] : memref<1x4x4x82xbf16, #tpu.memory_space<vmem>>, vector<1x1x4x72xbf16>
    %33 = vector.shape_cast %32 : vector<1x1x4x72xbf16> to vector<4x72xbf16>
    %34 = arith.extf %33 : vector<4x72xbf16> to vector<4x72xf32>
    %c32 = arith.constant 32 : index
    %c0_39 = arith.constant 0 : index
    %35 = vector.load %arg6[%c32, %c0_39] : memref<36x72xf32, #tpu.memory_space<vmem>>, vector<4x72xf32>
    tpu.vector_store %arg6[%c32, %c0_39], %34 {strides = array<i32>} : memref<36x72xf32, #tpu.memory_space<vmem>>, vector<4x72xf32>,
    %c0_40 = arith.constant 0 : index
    %c0_41 = arith.constant 0 : index
    %36 = vector.load %arg6[%c0_40, %c0_41] : memref<36x72xf32, #tpu.memory_space<vmem>>, vector<36x72xf32>
    %37 = arith.truncf %36 : vector<36x72xf32> to vector<36x72xbf16>
    %c0_42 = arith.constant 0 : index
    %c0_43 = arith.constant 0 : index
    %38 = vector.load %arg1[%c0_42, %c0_43] : memref<8x36xbf16, #tpu.memory_space<vmem>>, vector<8x36xbf16>
    %cst = arith.constant dense<0.000000e+00> : vector<8x72xf32>
    %39 = tpu.matmul %38, %37, %cst {dimension_numbers = #tpu.dot_dimension_numbers<[1], [0], [0], [1], [0, 0, 1, 1], [], []>} : vector<8x36xbf16>, vector<36x72xbf16>, vector<8x72xf32> -> vector<8x72xf32>
    %c0_44 = arith.constant 0 : index
    %c0_45 = arith.constant 0 : index
    %40 = vector.load %arg2[%c0_44, %c0_45] : memref<8x1xf32, #tpu.memory_space<vmem>>, vector<8x1xf32>
    %41 = vector.broadcast %40 : vector<8x1xf32> to vector<8x72xf32>
    %42 = arith.addf %39, %41 : vector<8x72xf32>
    %c0_46 = arith.constant 0 : index
    %c0_47 = arith.constant 0 : index
    %c0_48 = arith.constant 0 : index
    %43 = vector.load %arg5[%c0_46, %c0_47, %c0_48] : memref<1x8x72xf32, #tpu.memory_space<vmem>>, vector<1x8x72xf32>
    %44 = vector.shape_cast %43 : vector<1x8x72xf32> to vector<8x72xf32>
    %45 = vector.shape_cast %42 : vector<8x72xf32> to vector<1x8x72xf32>
    tpu.vector_store %arg5[%c0_46, %c0_47, %c0_48], %45 {strides = array<i32>} : memref<1x8x72xf32, #tpu.memory_space<vmem>>, vector<1x8x72xf32>,
    %cst_49 = arith.constant 2.000000e-01 : f32
    %46 = vector.broadcast %cst_49 : f32 to vector<8x72xf32>
    %47 = arith.mulf %46, %42 : vector<8x72xf32>
    %48 = arith.maximumf %42, %47 : vector<8x72xf32>
    %c0_50 = arith.constant 0 : index
    %c0_51 = arith.constant 0 : index
    %c0_52 = arith.constant 0 : index
    %49 = vector.load %arg4[%c0_50, %c0_51, %c0_52] : memref<1x8x72xf32, #tpu.memory_space<vmem>>, vector<1x8x72xf32>
    %50 = vector.shape_cast %49 : vector<1x8x72xf32> to vector<8x72xf32>
    %51 = vector.shape_cast %48 : vector<8x72xf32> to vector<1x8x72xf32>
    tpu.vector_store %arg4[%c0_50, %c0_51, %c0_52], %51 {strides = array<i32>} : memref<1x8x72xf32, #tpu.memory_space<vmem>>, vector<1x8x72xf32>,
    return
  }
  func.func @transform_0(%arg0: i32) -> (i32, i32) {
    %c0_i32 = arith.constant 0 : i32
    %c0_i32_0 = arith.constant 0 : i32
    %c0_i32_1 = arith.constant 0 : i32
    return %c0_i32, %c0_i32_0 : i32, i32
  }
  func.func @transform_1(%arg0: i32) -> (i32, i32) {
    %c0_i32 = arith.constant 0 : i32
    %c0_i32_0 = arith.constant 0 : i32
    %c0_i32_1 = arith.constant 0 : i32
    return %c0_i32, %c0_i32_0 : i32, i32
  }
  func.func @transform_2(%arg0: i32) -> (i32, i32, i32, i32) {
    %c0_i32 = arith.constant 0 : i32
    %c0_i32_0 = arith.constant 0 : i32
    %c0_i32_1 = arith.constant 0 : i32
    %c0_i32_2 = arith.constant 0 : i32
    return %arg0, %c0_i32, %c0_i32_0, %c0_i32_1 : i32, i32, i32, i32
  }
  func.func @transform_3(%arg0: i32) -> (i32, i32, i32) {
    %c0_i32 = arith.constant 0 : i32
    %c0_i32_0 = arith.constant 0 : i32
    %c0_i32_1 = arith.constant 0 : i32
    return %arg0, %c0_i32, %c0_i32_0 : i32, i32, i32
  }
  func.func @transform_4(%arg0: i32) -> (i32, i32, i32) {
    %c0_i32 = arith.constant 0 : i32
    %c0_i32_0 = arith.constant 0 : i32
    %c0_i32_1 = arith.constant 0 : i32
    return %arg0, %c0_i32, %c0_i32_0 : i32, i32, i32
  }
}

</mosaic_0001>

<llo_original>
// kernel: tpu_custom_call.1
$region0: #{tpu_custom_call.1}
  #allocation0 [shape = 'u32[]', space=smem, size = 0x4, offset = 0x4, fixed_abs, tag = 'smem constant byte address 0x4 - core index']
  #allocation1 [shape = 'u32[72,128]{1,0:T(1,128)}', space=vmem, size = 0x9000, scoped, tag = 'internal scratch']
  #allocation2 [shape = 'f32[36,72]{1,0:T(8,128)}', space=vmem, size = 0x5000, scoped, tag = 'scratch operand']
  %s0 = inlined_call_operand.vmem [shape: bf16[8,36], index: 0, kind: input, shape index: {}]
  %s1 = inlined_call_operand.vmem [shape: f32[8,1], index: 1, kind: input, shape index: {}]
  %s2 = inlined_call_operand.hbm [shape: bf16[2,4,4,82], index: 2, kind: input, shape index: {}]
  %s3 = inlined_call_operand.hbm [shape: f32[2,8,72], index: 3, kind: output, shape index: {0}]
  %s4 = inlined_call_operand.hbm [shape: f32[2,8,72], index: 4, kind: output, shape index: {1}]
  %5 = xla_tuple %s3, %s4
  %s6 = sld [smem:[#allocation0]]
  $region57: #{tpu_custom_call.1} parent=0
    _
  %s8 = ssub.s32 1, %s6
  %s9 = scalar_select 0, %s8, %s6
  $region1: #{tpu_custom_call.1} parent=0
    #allocation3 [shape = 'u8[8192]{0}', space=vmem, size = 0x2000, scoped, tag = 'input window, operand 2']
    #allocation4 [shape = 's32[2]{0}', space=sflag, size = 0x8, scoped, tag = 'scoped memory for tpu_custom_call.1']
    #allocation5 [shape = 's32[2]{0}', space=sflag, size = 0x8, scoped, tag = 'scoped memory for tpu_custom_call.1']
    #allocation6 [shape = 'u8[8192]{0}', space=vmem, size = 0x2000, scoped, tag = 'output window, operand 0']
    #allocation7 [shape = 'u8[8192]{0}', space=vmem, size = 0x2000, scoped, tag = 'output window, operand 1']
    #allocation8 [shape = 's32[2]{0}', space=sflag, size = 0x8, scoped, tag = 'scoped memory for tpu_custom_call.1']
    %10 = vsyncpa [#allocation4], 0
    %s11 = scalar_lea.sflag [#allocation4], 1
    %12 = vsyncpa %s11, 0
    %13 = vsyncpa [#allocation5], 0
    %s14 = scalar_lea.sflag [#allocation5], 1
    %15 = vsyncpa %s14, 0
    %16 = vsyncpa [#allocation8], 0
    %s17 = scalar_lea.sflag [#allocation8], 1
    %18 = vsyncpa %s17, 0
    loop: start=0, step=1, limit=4
    $region2: #{tpu_custom_call.1} parent=1 // loop_pre_header
      _
    $region3: #{tpu_custom_call.1} parent=1 // loop_header
      %s20 = sphi 0, %s24
      %p21 = scmp.ge.s32.totalorder %s20, 4
      %s28 = sphi 0, %s28
      %s30 = sphi 0, %s28
      %s31 = sphi 0, %s30
      %s45 = sphi 0, %s31
      %s49 = sphi 0, %s49
      %s51 = sphi 0, %s49
      %s52 = sphi 0, %s51
      %s66 = sphi 0, %s52
      %s72 = sphi 0, %s74
      %s75 = sphi 0, %s72
      %s76 = sphi 0, %s75
      %s92 = sphi 0, %s76
      %s98 = sphi 0, %s100
      %s101 = sphi 0, %s98
      %s102 = sphi 0, %s101
      %s118 = sphi 0, %s102
      %s124 = sphi 0, %s126
      %s127 = sphi 0, %s124
      %s128 = sphi 0, %s127
      %s144 = sphi 0, %s128
    $region4: #{tpu_custom_call.1} parent=1 // loop_header_branch
      %23 = sbr.rel (%p21) target = $region8
    $region5: #{tpu_custom_call.1} parent=1 // loop_body
      %s25 = ssub.s32 %s20, 1
      %s26 = ssub.s32 %s20, 2
      %s27 = sadd.s32 %s20, 1
      %s29 = sadd.s32 %s28, 1
      %p32 = scmp.eq.s32.totalorder %s20, 1
      %p33 = scmp.ne.s32.totalorder %s28, %s30
      %p34 = scmp.eq.s32.totalorder %s20, 0
      %p35 = por %p33, %p34
      %p36 = scmp.ne.s32.totalorder %s28, %s30
      %p37 = scmp.eq.s32.totalorder %s25, 1
      %p38 = por %p36, %p37
      %p39 = scmp.ne.s32.totalorder %s30, %s31
      %p40 = scmp.eq.s32.totalorder %s25, 0
      %p41 = por %p39, %p40
      %p42 = scmp.ne.s32.totalorder %s30, %s31
      %p43 = scmp.eq.s32.totalorder %s26, 1
      %p44 = por %p42, %p43
      %p46 = scmp.ne.s32.totalorder %s31, %s45
      %p47 = scmp.eq.s32.totalorder %s26, 0
      %p48 = por %p46, %p47
      %s50 = sadd.s32 %s49, 1
      %p53 = scmp.eq.s32.totalorder %s20, 1
      %p54 = scmp.ne.s32.totalorder %s49, %s51
      %p55 = scmp.eq.s32.totalorder %s20, 0
      %p56 = por %p54, %p55
      %p57 = scmp.ne.s32.totalorder %s49, %s51
      %p58 = scmp.eq.s32.totalorder %s25, 1
      %p59 = por %p57, %p58
      %p60 = scmp.ne.s32.totalorder %s51, %s52
      %p61 = scmp.eq.s32.totalorder %s25, 0
      %p62 = por %p60, %p61
      %p63 = scmp.ne.s32.totalorder %s51, %s52
      %p64 = scmp.eq.s32.totalorder %s26, 1
      %p65 = por %p63, %p64
      %p67 = scmp.ne.s32.totalorder %s52, %s66
      %p68 = scmp.eq.s32.totalorder %s26, 0
      %p69 = por %p67, %p68
      %s70 = ssub.s32 %s20, %s27
      %p71 = scmp.eq.s32.totalorder %s70, 0
      %s73 = sadd.s32 %s72, 1
      %s74 = scalar_select %p71, %s72, %s73
      %p77 = pneg %p71
      %p78 = scmp.eq.s32.totalorder %s20, 1
      %p79 = por %p77, %p78
      %p80 = scmp.ne.s32.totalorder %s72, %s75
      %p81 = scmp.eq.s32.totalorder %s20, 0
      %p82 = por %p80, %p81
      %p83 = scmp.ne.s32.totalorder %s72, %s75
      %p84 = scmp.eq.s32.totalorder %s25, 1
      %p85 = por %p83, %p84
      %p86 = scmp.ne.s32.totalorder %s75, %s76
      %p87 = scmp.eq.s32.totalorder %s25, 0
      %p88 = por %p86, %p87
      %p89 = scmp.ne.s32.totalorder %s75, %s76
      %p90 = scmp.eq.s32.totalorder %s26, 1
      %p91 = por %p89, %p90
      %p93 = scmp.ne.s32.totalorder %s76, %s92
      %p94 = scmp.eq.s32.totalorder %s26, 0
      %p95 = por %p93, %p94
      %s96 = ssub.s32 %s20, %s27
      %p97 = scmp.eq.s32.totalorder %s96, 0
      %s99 = sadd.s32 %s98, 1
      %s100 = scalar_select %p97, %s98, %s99
      %p103 = pneg %p97
      %p104 = scmp.eq.s32.totalorder %s20, 1
      %p105 = por %p103, %p104
      %p106 = scmp.ne.s32.totalorder %s98, %s101
      %p107 = scmp.eq.s32.totalorder %s20, 0
      %p108 = por %p106, %p107
      %p109 = scmp.ne.s32.totalorder %s98, %s101
      %p110 = scmp.eq.s32.totalorder %s25, 1
      %p111 = por %p109, %p110
      %p112 = scmp.ne.s32.totalorder %s101, %s102
      %p113 = scmp.eq.s32.totalorder %s25, 0
      %p114 = por %p112, %p113
      %p115 = scmp.ne.s32.totalorder %s101, %s102
      %p116 = scmp.eq.s32.totalorder %s26, 1
      %p117 = por %p115, %p116
      %p119 = scmp.ne.s32.totalorder %s102, %s118
      %p120 = scmp.eq.s32.totalorder %s26, 0
      %p121 = por %p119, %p120
      %s122 = ssub.s32 %s20, %s27
      %p123 = scmp.eq.s32.totalorder %s122, 0
      %s125 = sadd.s32 %s124, 1
      %s126 = scalar_select %p123, %s124, %s125
      %p129 = pneg %p123
      %p130 = scmp.eq.s32.totalorder %s20, 1
      %p131 = por %p129, %p130
      %p132 = scmp.ne.s32.totalorder %s124, %s127
      %p133 = scmp.eq.s32.totalorder %s20, 0
      %p134 = por %p132, %p133
      %p135 = scmp.ne.s32.totalorder %s124, %s127
      %p136 = scmp.eq.s32.totalorder %s25, 1
      %p137 = por %p135, %p136
      %p138 = scmp.ne.s32.totalorder %s127, %s128
      %p139 = scmp.eq.s32.totalorder %s25, 0
      %p140 = por %p138, %p139
      %p141 = scmp.ne.s32.totalorder %s127, %s128
      %p142 = scmp.eq.s32.totalorder %s26, 1
      %p143 = por %p141, %p142
      %p145 = scmp.ne.s32.totalorder %s128, %s144
      %p146 = scmp.eq.s32.totalorder %s26, 0
      %p147 = por %p145, %p146
      %p148 = scmp.le.s32.totalorder 1, %s20
      %p149 = scmp.lt.s32.totalorder %s20, 3
      %p150 = pnand %p148, %p149
      %p151 = pneg %p150
      // Predicated region
      $region9: #{tpu_custom_call.1} parent=5 // pred_check
        _
      $region10: #{tpu_custom_call.1} parent=5 // pred_check_branch
        %153 = sbr.rel (%p150) target = $region12
      $region11: #{tpu_custom_call.1} parent=5 // pred_region
        %s154 = ssub.s32 %s20, 1
        // Predicated region
        $region13: #{tpu_custom_call.1} parent=11 // pred_check
          %p155 = pneg %p41
        $region14: #{tpu_custom_call.1} parent=11 // pred_check_branch
          %157 = sbr.rel (%p155) target = $region16
        $region15: #{tpu_custom_call.1} parent=11 // pred_region
          _
        $region16: #{tpu_custom_call.1} parent=11 // pred_fallthru
          _
        // Predicated region
        $region17: #{tpu_custom_call.1} parent=11 // pred_check
          %p158 = pneg %p62
        $region18: #{tpu_custom_call.1} parent=11 // pred_check_branch
          %160 = sbr.rel (%p158) target = $region20
        $region19: #{tpu_custom_call.1} parent=11 // pred_region
          _
        $region20: #{tpu_custom_call.1} parent=11 // pred_fallthru
          _
      $region12: #{tpu_custom_call.1} parent=5 // pred_fallthru
        _
      %p161 = scmp.lt.s32.totalorder %s20, 2
      // Predicated region
      $region21: #{tpu_custom_call.1} parent=5 // pred_check
        %p162 = pneg %p161
      $region22: #{tpu_custom_call.1} parent=5 // pred_check_branch
        %164 = sbr.rel (%p162) target = $region24
      $region23: #{tpu_custom_call.1} parent=5 // pred_region
        // Predicated region
        $region25: #{tpu_custom_call.1} parent=23 // pred_check
          %p165 = pneg %p82
        $region26: #{tpu_custom_call.1} parent=23 // pred_check_branch
          %167 = sbr.rel (%p165) target = $region28
        $region27: #{tpu_custom_call.1} parent=23 // pred_region
          %s168 = sand.u32 %s72, 1
          %s169 = scalar_lea.sflag [#allocation4], %s168
          %s170 = sand.u32 %s72, 1
          %s171 = smul.addr %s170, 8
          %s172 = scalar_lea.vmem [#allocation3], %s171
          %174 = vsyncadd %s169, 0
          %s175 = smul.addr %s20, 4
          %s176 = smul.addr %s175, 2
          %s177 = scalar_lea.hbm %s2, %s176
          %s178 = sshll.u32 %s177, 4
          %s179 = int_to_ptr.hbm [resolvable:$true] %s178
          %s180 = sshll.u32 %s172, 4
          %s181 = int_to_ptr.vmem [resolvable:$true] %s180
          %186 = dma.hbm_to_vmem [thread:$0]  %s179, 128, %s181, %s169, 32, 32, 2
        $region28: #{tpu_custom_call.1} parent=23 // pred_fallthru
          _
      $region24: #{tpu_custom_call.1} parent=5 // pred_fallthru
        _
      %p187 = scmp.le.s32.totalorder 1, %s20
      %p188 = scmp.lt.s32.totalorder %s20, 3
      %p189 = pnand %p187, %p188
      %p190 = pneg %p189
      // Predicated region
      $region29: #{tpu_custom_call.1} parent=5 // pred_check
        _
      $region30: #{tpu_custom_call.1} parent=5 // pred_check_branch
        %192 = sbr.rel (%p189) target = $region32
      $region31: #{tpu_custom_call.1} parent=5 // pred_region
        %s193 = ssub.s32 %s20, 1
        %s194 = sand.u32 %s75, 1
        %s195 = scalar_lea.sflag [#allocation4], %s194
        %s196 = sand.u32 %s75, 1
        %s197 = smul.addr %s196, 8
        %s198 = scalar_lea.vmem [#allocation3], %s197
        // Predicated region
        $region33: #{tpu_custom_call.1} parent=31 // pred_check
          %p199 = pneg %p88
        $region34: #{tpu_custom_call.1} parent=31 // pred_check_branch
          %201 = sbr.rel (%p199) target = $region36
        $region35: #{tpu_custom_call.1} parent=31 // pred_region
          %203 = dma.done %s195, 128
        $region36: #{tpu_custom_call.1} parent=31 // pred_fallthru
          _
        %p204 = pneg %p41
        %p205 = pneg %p38
        %p206 = pneg %p62
        %p207 = pneg %p59
        %s208 = sand.u32 %s75, 1
        %s209 = scalar_lea.sflag [#allocation4], %s208
        %s210 = sand.u32 %s75, 1
        %s211 = smul.addr %s210, 8
        %s212 = scalar_lea.vmem [#allocation3], %s211
        %p213 = pneg %p88
        %p214 = pneg %p85
        %p215 = pneg %p114
        %p216 = pneg %p111
        %s217 = sand.u32 %s101, 1
        %s218 = scalar_lea.sflag [#allocation5], %s217
        %s219 = sand.u32 %s101, 1
        %s220 = smul.addr %s219, 8
        %s221 = scalar_lea.vmem [#allocation6], %s220
        %p222 = pneg %p140
        %p223 = pneg %p137
        %s224 = sand.u32 %s127, 1
        %s225 = scalar_lea.sflag [#allocation8], %s224
        %s226 = sand.u32 %s127, 1
        %s227 = smul.addr %s226, 8
        %s228 = scalar_lea.vmem [#allocation7], %s227
        %v230 = vld [vmem:[%s198] sm:$0x3]
        %v231 = vunpack.c.l.bf16 %v230
        %vm232 = vcmask 584704
        %233 = vst.msk [vmem:[#allocation2] sm:$0xf] %vm232, %v231
        %s234 = scalar_lea.vmem %s198, 2 [#allocation3]
        %v235 = vld [vmem:[%s234] sm:$0x3]
        %v236 = vunpack.c.l.bf16 %v235
        %237 = vst.msk [vmem:[#allocation2 + $0x4] sm:$0xf] %vm232, %v236
        %v238 = vld [vmem:[%s198] sm:$0x3]
        %v239 = vunpack.c.l.bf16 %v238
        %241 = vst [vmem:[#allocation1] ss:$2 sm:$0xff] %v239
        %v242 = vld.sshfl [vmem:[#allocation1] sm:$0xff pattern:$0x75316420]
        %243 = vrot.lane.b32.xlu0 %v242, 127
        %v244 = vpop.permute.xlu0 %243
        %246 = vst.msk [vmem:[#allocation2 + $0x8] sm:$0xf] %vm232, %v244
        %s247 = scalar_lea.vmem %s198, 4 [#allocation3]
        %v248 = vld [vmem:[%s247] sm:$0x3]
        %v249 = vunpack.c.l.bf16 %v248
        %250 = vst.msk [vmem:[#allocation2 + $0xc] sm:$0xf] %vm232, %v249
        %s251 = scalar_lea.vmem %s198, 6 [#allocation3]
        %v252 = vld [vmem:[%s251] sm:$0x3]
        %v253 = vunpack.c.l.bf16 %v252
        %254 = vst.msk [vmem:[#allocation2 + $0x10] sm:$0xf] %vm232, %v253
        %v255 = vld [vmem:[%s247] sm:$0x3]
        %v256 = vunpack.c.l.bf16 %v255
        %258 = vst [vmem:[#allocation1] ss:$2 sm:$0xff] %v256
        %v259 = vld.sshfl [vmem:[#allocation1] sm:$0xff pattern:$0x75316420]
        %260 = vrot.lane.b32.xlu0 %v259, 127
        %v261 = vpop.permute.xlu0 %260
        %263 = vst.msk [vmem:[#allocation2 + $0x14] sm:$0xf] %vm232, %v261
        %v264 = vld [vmem:[%s198] sm:$0x3]
        %v265 = vunpack.c.l.bf16 %v264
        %267 = vst [vmem:[#allocation1] ss:$2 sm:$0xff] %v265
        %v268 = vld.sshfl [vmem:[#allocation1] sm:$0xff pattern:$0x75316420]
        %269 = vrot.lane.b32.xlu0 %v268, 119
        %v270 = vpop.permute.xlu0 %269
        %272 = vst.msk [vmem:[#allocation2 + $0x18] sm:$0xf] %vm232, %v270
        %v273 = vld [vmem:[%s234] sm:$0x3]
        %v274 = vunpack.c.l.bf16 %v273
        %276 = vst [vmem:[#allocation1] ss:$2 sm:$0xff] %v274
        %v277 = vld.sshfl [vmem:[#allocation1] sm:$0xff pattern:$0x75316420]
        %278 = vrot.lane.b32.xlu0 %v277, 119
        %v279 = vpop.permute.xlu0 %278
        %281 = vst.msk [vmem:[#allocation2 + $0x1c] sm:$0xf] %vm232, %v279
        %v282 = vld [vmem:[%s198] sm:$0x3]
        %v283 = vunpack.c.l.bf16 %v282
        %285 = vst [vmem:[#allocation1] ss:$2 sm:$0xff] %v283
        %v286 = vld.sshfl [vmem:[#allocation1] sm:$0xff pattern:$0x75316420]
        %287 = vrot.lane.b32.xlu0 %v286, 118
        %v288 = vpop.permute.xlu0 %287
        %290 = vst.msk [vmem:[#allocation2 + $0x20] sm:$0xf] %vm232, %v288
        %v291 = vld [vmem:[#allocation2] sm:$0xff]
        %v292 = vld [vmem:[#allocation2 + $0x8] sm:$0xff]
        %v293 = vld [vmem:[#allocation2 + $0x10] sm:$0xff]
        %v294 = vld [vmem:[#allocation2 + $0x18] sm:$0xff]
        %v295 = vld [vmem:[#allocation2 + $0x20] sm:$0xf]
        %v296 = vpack.c.bf16 %v292, %v291
        %v297 = vpack.c.bf16 %v294, %v293
        %v298 = vpack.c.bf16 %v295, %v295
        %v299 = vld [vmem:[%s0] sm:$0xf]
        %v300 = vld [vmem:[%s1] sm:$0xff]
        %302 = vset.pattern.permute.xlu0 0
        %303 = vperm.xlu0 %302, %v300
        %v304 = vpop.permute.xlu0 %303
        %vm306 = vcmask 293888
        %v308 = vsel %vm306, %v299, 0
        %vm310 = vcmask 1041408
        %v312 = vsel %vm310, %v298, 0
        %314 = vmatpush.bf16.msra.mxu0 0
        %315 = vmatpush.bf16.msra.mxu0 0
        %316 = vmatpush.bf16.msra.mxu0 0
        %317 = vmatpush.bf16.msra.mxu0 0
        %318 = vmatpush.bf16.msra.mxu0 0
        %319 = vmatpush.bf16.msra.mxu0 %v312
        %320 = vmatpush.bf16.msra.mxu0 %v297
        %321 = vmatpush.bf16.msra.mxu0 %v296
        %322 = vmatmul.bf16.gmra.mxu0 %v308
        %v323 = vpop.f32.mrf.mxu0
        %v324 = vadd.f32 %v304, %v323
        %v325 = vpop.f32.mrf.mxu0
        %326 = vdwg.mxu0
        %vm327 = vcmask 588800
        %328 = vst.msk [vmem:[%s228] sm:$0xff] %vm327, %v324
        %v329 = vmul.f32 %v324, 0.2
        %v330 = vmax.f32 %v324, %v329
        %331 = vst.msk [vmem:[%s221] sm:$0xff] %vm327, %v330
        %s332 = sand.u32 %s101, 1
        %s333 = scalar_lea.sflag [#allocation5], %s332
        %s334 = sand.u32 %s101, 1
        %s335 = smul.addr %s334, 8
        %s336 = scalar_lea.vmem [#allocation6], %s335
        %s337 = sand.u32 %s127, 1
        %s338 = scalar_lea.sflag [#allocation8], %s337
        %s339 = sand.u32 %s127, 1
        %s340 = smul.addr %s339, 8
        %s341 = scalar_lea.vmem [#allocation7], %s340
        // Predicated region
        $region37: #{tpu_custom_call.1} parent=31 // pred_check
          %p342 = pneg %p111
        $region38: #{tpu_custom_call.1} parent=31 // pred_check_branch
          %344 = sbr.rel (%p342) target = $region40
        $region39: #{tpu_custom_call.1} parent=31 // pred_region
          %346 = vsyncadd %s333, 0
          %s347 = smul.addr %s25, 8
          %s348 = scalar_lea.hbm %s3, %s347
          %s350 = sshll.u32 %s336, 4
          %s351 = int_to_ptr.vmem [resolvable:$true] %s350
          %s352 = sshll.u32 %s348, 4
          %s353 = int_to_ptr.hbm [resolvable:$true] %s352
          %355 = dma.vmem_to_hbm [thread:$0]  %s351, 128, %s353, %s333
        $region40: #{tpu_custom_call.1} parent=31 // pred_fallthru
          _
        // Predicated region
        $region41: #{tpu_custom_call.1} parent=31 // pred_check
          %p356 = pneg %p137
        $region42: #{tpu_custom_call.1} parent=31 // pred_check_branch
          %358 = sbr.rel (%p356) target = $region44
        $region43: #{tpu_custom_call.1} parent=31 // pred_region
          %360 = vsyncadd %s338, 0
          %s361 = smul.addr %s25, 8
          %s362 = scalar_lea.hbm %s4, %s361
          %s364 = sshll.u32 %s341, 4
          %s365 = int_to_ptr.vmem [resolvable:$true] %s364
          %s366 = sshll.u32 %s362, 4
          %s367 = int_to_ptr.hbm [resolvable:$true] %s366
          %369 = dma.vmem_to_hbm [thread:$0]  %s365, 128, %s367, %s338
        $region44: #{tpu_custom_call.1} parent=31 // pred_fallthru
          _
      $region32: #{tpu_custom_call.1} parent=5 // pred_fallthru
        _
      %p370 = scmp.le.s32.totalorder 2, %s20
      // Predicated region
      $region45: #{tpu_custom_call.1} parent=5 // pred_check
        %p371 = pneg %p370
      $region46: #{tpu_custom_call.1} parent=5 // pred_check_branch
        %373 = sbr.rel (%p371) target = $region48
      $region47: #{tpu_custom_call.1} parent=5 // pred_region
        %s374 = ssub.s32 %s20, 2
        // Predicated region
        $region49: #{tpu_custom_call.1} parent=47 // pred_check
          %p375 = pneg %p117
        $region50: #{tpu_custom_call.1} parent=47 // pred_check_branch
          %377 = sbr.rel (%p375) target = $region52
        $region51: #{tpu_custom_call.1} parent=47 // pred_region
          %s378 = sand.u32 %s102, 1
          %s379 = scalar_lea.sflag [#allocation5], %s378
          %s380 = sand.u32 %s102, 1
          %s381 = smul.addr %s380, 8
          %s382 = scalar_lea.vmem [#allocation6], %s381
          %384 = dma.done %s379, 128
        $region52: #{tpu_custom_call.1} parent=47 // pred_fallthru
          _
        // Predicated region
        $region53: #{tpu_custom_call.1} parent=47 // pred_check
          %p385 = pneg %p143
        $region54: #{tpu_custom_call.1} parent=47 // pred_check_branch
          %387 = sbr.rel (%p385) target = $region56
        $region55: #{tpu_custom_call.1} parent=47 // pred_region
          %s388 = sand.u32 %s128, 1
          %s389 = scalar_lea.sflag [#allocation8], %s388
          %s390 = sand.u32 %s128, 1
          %s391 = smul.addr %s390, 8
          %s392 = scalar_lea.vmem [#allocation7], %s391
          %394 = dma.done %s389, 128
        $region56: #{tpu_custom_call.1} parent=47 // pred_fallthru
          _
      $region48: #{tpu_custom_call.1} parent=5 // pred_fallthru
        _
    $region6: #{tpu_custom_call.1} parent=1 // loop_footer
      %s24 = sadd.s32 1, %s20
    $region7: #{tpu_custom_call.1} parent=1 // loop_footer_branch
      %19 = sbr.rel target = $region3
    $region8: #{tpu_custom_call.1} parent=1 // loop_exit
      _
    %395 = vsyncpa [#allocation4], 1
    %s396 = scalar_lea.sflag [#allocation4], 1
    %397 = vsyncpa %s396, 1
    %398 = vsyncpa [#allocation5], 1
    %s399 = scalar_lea.sflag [#allocation5], 1
    %400 = vsyncpa %s399, 1
    %401 = vsyncpa [#allocation8], 1
    %s402 = scalar_lea.sflag [#allocation8], 1
    %403 = vsyncpa %s402, 1

</llo_original>
